<compile_context>
chip_gen: v7x
topology: tpu7x:2x2x1
jax: 0.10.0
libtpu: 0.0.40
codegen_flags: <defaults>
</compile_context>

<pallas_src>
import jax
import jax.numpy as jnp
from jax.experimental import pallas as pl
from jax.experimental.pallas import tpu as pltpu

BN_EPS = 1e-5


# --------------------------------------------------------------------------- #
# Kernels
# --------------------------------------------------------------------------- #
def _conv_tile(taps_ref, w_ref):
    """One conv tile: (OC, K) @ (K, tile_hw) on the MXU, bf16 in / f32 out."""
    return jnp.dot(w_ref[...], taps_ref[0], preferred_element_type=jnp.float32)


def _stats_kernel(taps_ref, w_ref, sum_ref, ssq_ref):
    """Pass 1: per-(image, spatial-tile) channel sum / sum-of-squares of the conv."""
    acc = _conv_tile(taps_ref, w_ref)                       # (OC, tile_hw) f32
    sum_ref[0, 0] = jnp.sum(acc, axis=1, keepdims=True)     # (OC, 1)
    ssq_ref[0, 0] = jnp.sum(acc * acc, axis=1, keepdims=True)


def _apply_kernel(taps_ref, w_ref, scale_ref, shift_ref, o_ref):
    """Pass 2: recompute conv tile, fused BN affine (one FMA) + ReLU, NCHW-layout store."""
    acc = _conv_tile(taps_ref, w_ref)                       # (OC, tile_hw) f32
    y = acc * scale_ref[...] + shift_ref[...]               # scale/shift: (OC, 1)
    o_ref[0] = jnp.maximum(y, 0.0).astype(o_ref.dtype)


# --------------------------------------------------------------------------- #
# Wrapper
# --------------------------------------------------------------------------- #
def _pick_tile_hw(K, OC, OHW, budget_bytes):
    """Largest spatial tile (output columns) that keeps double-buffered blocks in budget."""
    fixed = 2 * (OC * K * 2) + 4 * (OC * 4)          # weights (x2 buffers) + scale/shift
    per_col = 2 * (K * 2 + OC * 4)                   # taps (bf16) + out (f32), double-buffered
    max_cols = max((budget_bytes - fixed) // per_col, 128)
    if OHW <= max_cols:
        return OHW, 1                                # single full-width tile, no padding
    tile = max((max_cols // 128) * 128, 128)         # lane-dense tiles
    nh = -(-OHW // tile)
    return tile, nh


def conv_bn_relu(x, weight, bias, gamma, beta, *, stride=2,
                 vmem_budget_bytes=28 * 1024 * 1024):
    """x: (N, C, H, W) NCHW; weight: (OC, C, KH, KW) OIHW (PyTorch conventions).

    `bias` is accepted for API parity but unused: under training-mode BatchNorm
    the per-channel mean subtraction cancels the conv bias exactly (this also
    keeps zero-padded spatial columns exactly zero, so they do not perturb the
    batch statistics when dividing by the real element count).
    """
    del bias
    N, C, H, W = x.shape
    OC, _, KH, KW = weight.shape
    ph, pw = KH // 2, KW // 2
    OH = (H + 2 * ph - KH) // stride + 1
    OW = (W + 2 * pw - KW) // stride + 1
    OHW = OH * OW
    K = KH * KW * C
    M = N * OHW                                      # real per-channel sample count

    # ---- glue: compact strided tap extraction (no K/OC padding, no transposes) ----
    xp = jnp.pad(x, ((0, 0), (0, 0), (ph, ph), (pw, pw))).astype(jnp.bfloat16)
    taps = []
    for kh in range(KH):
        for kw in range(KW):
            taps.append(xp[:, :,
                           kh:kh + (OH - 1) * stride + 1:stride,
                           kw:kw + (OW - 1) * stride + 1:stride])
    # (N, KH*KW, C, OH, OW) -> (N, K, OHW); row index (kh*KW+kw)*C + c, col oh*OW+ow
    taps = jnp.stack(taps, axis=1).reshape(N, K, OHW)

    # weight (OC, C, KH, KW) -> (OC, K) matching tap row order (tap-major, channel-minor)
    w2 = weight.transpose(0, 2, 3, 1).reshape(OC, K).astype(jnp.bfloat16)

    # ---- VMEM-budget-derived spatial tiling ---------------------------------------
    tile_hw, nh = _pick_tile_hw(K, OC, OHW, vmem_budget_bytes)
    ohw_pad = tile_hw * nh
    if ohw_pad != OHW:
        taps = jnp.pad(taps, ((0, 0), (0, 0), (0, ohw_pad - OHW)))

    cp = pltpu.CompilerParams(
        dimension_semantics=("parallel", "parallel"),
        vmem_limit_bytes=40 * 1024 * 1024,           # v7x-safe (64 MiB physical)
    )

    # ---- pass 1: per-(image, tile) channel sums / sums-of-squares ------------------
    psum, pssq = pl.pallas_call(
        _stats_kernel,
        out_shape=(
            jax.ShapeDtypeStruct((N, nh, OC, 1), jnp.float32),
            jax.ShapeDtypeStruct((N, nh, OC, 1), jnp.float32),
        ),
        grid=(N, nh),
        in_specs=[
            pl.BlockSpec((1, K, tile_hw), lambda n, h: (n, 0, h)),
            pl.BlockSpec((OC, K), lambda n, h: (0, 0)),      # constant -> fetched once
        ],
        out_specs=(
            pl.BlockSpec((1, 1, OC, 1), lambda n, h: (n, h, 0, 0)),
            pl.BlockSpec((1, 1, OC, 1), lambda n, h: (n, h, 0, 0)),
        ),
        compiler_params=cp,
    )(taps, w2)

    # ---- tiny XLA reduction -> fused BN scale / shift (computed once) --------------
    csum = jnp.sum(psum, axis=(0, 1))                          # (OC, 1)
    cssq = jnp.sum(pssq, axis=(0, 1))                          # (OC, 1)
    mean = csum / M
    var = jnp.maximum(cssq / M - mean * mean, 0.0)             # clamp vs cancellation
    scale = gamma.reshape(OC, 1).astype(jnp.float32) * jax.lax.rsqrt(var + BN_EPS)
    shift = beta.reshape(OC, 1).astype(jnp.float32) - mean * scale

    # ---- pass 2: recompute conv, BN + ReLU, store directly in NCHW layout -----------
    out = pl.pallas_call(
        _apply_kernel,
        out_shape=jax.ShapeDtypeStruct((N, OC, ohw_pad), jnp.float32),
        grid=(N, nh),
        in_specs=[
            pl.BlockSpec((1, K, tile_hw), lambda n, h: (n, 0, h)),
            pl.BlockSpec((OC, K), lambda n, h: (0, 0)),
            pl.BlockSpec((OC, 1), lambda n, h: (0, 0)),
            pl.BlockSpec((OC, 1), lambda n, h: (0, 0)),
        ],
        out_specs=pl.BlockSpec((1, OC, tile_hw), lambda n, h: (n, 0, h)),
        compiler_params=cp,
    )(taps, w2, scale, shift)

    if ohw_pad != OHW:
        out = out[:, :, :OHW]
    return out.reshape(N, OC, OH, OW)                          # free reshape, already NCHW


# --------------------------------------------------------------------------- #
# Pure-JAX reference
# --------------------------------------------------------------------------- #
def _reference(x, weight, bias, gamma, beta, *, stride=2):
    OC = weight.shape[0]
    ph, pw = weight.shape[2] // 2, weight.shape[3] // 2
    conv = jax.lax.conv_general_dilated(
        x, weight, window_strides=(stride, stride),
        padding=[(ph, ph), (pw, pw)],
        dimension_numbers=("NCHW", "OIHW", "NCHW"),
    ) + bias.reshape(1, OC, 1, 1)
    mean = conv.mean(axis=(0, 2, 3), keepdims=True)
    var = ((conv - mean) ** 2).mean(axis=(0, 2, 3), keepdims=True)
    y = (conv - mean) * jax.lax.rsqrt(var + BN_EPS)
    y = y * gamma.reshape(1, OC, 1, 1) + beta.reshape(1, OC, 1, 1)
    return jnp.maximum(y, 0.0)


if __name__ == "__main__":
    key = jax.random.PRNGKey(0)
    k_x, k_w, k_b = jax.random.split(key, 3)

    # ConvBnRelu(in_channels=4, out_channels=8, kernel_size=(3, 3), stride=2)
    N, C, H, W = 2, 4, 16, 16
    OC, KH, KW = 8, 3, 3

    x = jax.random.normal(k_x, (N, C, H, W), dtype=jnp.float32)
    fan_in = C * KH * KW
    weight = jax.random.normal(k_w, (OC, C, KH, KW), dtype=jnp.float32) / jnp.sqrt(fan_in)
    bias = jax.random.uniform(k_b, (OC,), dtype=jnp.float32,
                              minval=-1.0 / jnp.sqrt(fan_in), maxval=1.0 / jnp.sqrt(fan_in))
    gamma = jnp.ones((OC,), dtype=jnp.float32)   # nn.BatchNorm2d default affine init
    beta = jnp.zeros((OC,), dtype=jnp.float32)

    out = conv_bn_relu(x, weight, bias, gamma, beta, stride=2)
    out = jax.block_until_ready(out)

    ref = _reference(x, weight, bias, gamma, beta, stride=2)
    assert out.shape == (N, OC, 8, 8), out.shape
    # bf16 MXU operands (f32 accumulate) -> slightly looser tolerance than pure f32.
    assert jnp.allclose(out, ref, atol=3e-2, rtol=3e-2), float(jnp.max(jnp.abs(out - ref)))

    print("KERNEL_OK")
</pallas_src>

<mosaic_0001>
module attributes {stable_mosaic.version = 11 : i64} {
  func.func @_stats_kernel(%arg0: i32, %arg1: i32, %arg2: memref<1x36x64xbf16, #tpu.memory_space<vmem>>, %arg3: memref<8x36xbf16, #tpu.memory_space<vmem>>, %arg4: memref<1x1x8x1xf32, #tpu.memory_space<vmem>>, %arg5: memref<1x1x8x1xf32, #tpu.memory_space<vmem>>) attributes {dimension_semantics = [#tpu.dimension_semantics<parallel>, #tpu.dimension_semantics<parallel>], iteration_bounds = array<i64: 2, 1>, scalar_prefetch = 0 : i64, scratch_operands = 0 : i64, tpu.core_type = #tpu.core_type<tc>, window_params = [{transform_indices = @transform_0, window_bounds = array<i64: 1, 36, 64>}, {pipeline_mode = #tpu.pipeline_mode<synchronous>, transform_indices = @transform_1, window_bounds = array<i64: 8, 36>}, {transform_indices = @transform_2, window_bounds = array<i64: 1, 1, 8, 1>}, {transform_indices = @transform_3, window_bounds = array<i64: 1, 1, 8, 1>}]} {
    %c0 = arith.constant 0 : index
    %c0_0 = arith.constant 0 : index
    %0 = vector.load %arg3[%c0, %c0_0] : memref<8x36xbf16, #tpu.memory_space<vmem>>, vector<8x36xbf16>
    %c0_1 = arith.constant 0 : index
    %c0_2 = arith.constant 0 : index
    %c0_3 = arith.constant 0 : index
    %1 = vector.load %arg2[%c0_1, %c0_2, %c0_3] : memref<1x36x64xbf16, #tpu.memory_space<vmem>>, vector<1x36x64xbf16>
    %2 = vector.shape_cast %1 : vector<1x36x64xbf16> to vector<36x64xbf16>
    %cst = arith.constant dense<0.000000e+00> : vector<8x64xf32>
    %3 = tpu.matmul %0, %2, %cst {dimension_numbers = #tpu.dot_dimension_numbers<[1], [0], [0], [1], [0, 0, 1, 1], [], []>} : vector<8x36xbf16>, vector<36x64xbf16>, vector<8x64xf32> -> vector<8x64xf32>
    %cst_4 = arith.constant dense<0.000000e+00> : vector<8xf32>
    %4 = vector.multi_reduction <add>, %3, %cst_4 [1] : vector<8x64xf32> to vector<8xf32>
    %5 = vector.shape_cast %4 : vector<8xf32> to vector<8x1xf32>
    %c0_5 = arith.constant 0 : index
    %c0_6 = arith.constant 0 : index
    %c0_7 = arith.constant 0 : index
    %c0_8 = arith.constant 0 : index
    %6 = vector.load %arg4[%c0_5, %c0_6, %c0_7, %c0_8] : memref<1x1x8x1xf32, #tpu.memory_space<vmem>>, vector<1x1x8x1xf32>
    %7 = vector.shape_cast %6 : vector<1x1x8x1xf32> to vector<8x1xf32>
    %8 = vector.shape_cast %5 : vector<8x1xf32> to vector<1x1x8x1xf32>
    tpu.vector_store %arg4[%c0_5, %c0_6, %c0_7, %c0_8], %8 {strides = array<i32>} : memref<1x1x8x1xf32, #tpu.memory_space<vmem>>, vector<1x1x8x1xf32>,
    %9 = arith.mulf %3, %3 : vector<8x64xf32>
    %cst_9 = arith.constant dense<0.000000e+00> : vector<8xf32>
    %10 = vector.multi_reduction <add>, %9, %cst_9 [1] : vector<8x64xf32> to vector<8xf32>
    %11 = vector.shape_cast %10 : vector<8xf32> to vector<8x1xf32>
    %c0_10 = arith.constant 0 : index
    %c0_11 = arith.constant 0 : index
    %c0_12 = arith.constant 0 : index
    %c0_13 = arith.constant 0 : index
    %12 = vector.load %arg5[%c0_10, %c0_11, %c0_12, %c0_13] : memref<1x1x8x1xf32, #tpu.memory_space<vmem>>, vector<1x1x8x1xf32>
    %13 = vector.shape_cast %12 : vector<1x1x8x1xf32> to vector<8x1xf32>
    %14 = vector.shape_cast %11 : vector<8x1xf32> to vector<1x1x8x1xf32>
    tpu.vector_store %arg5[%c0_10, %c0_11, %c0_12, %c0_13], %14 {strides = array<i32>} : memref<1x1x8x1xf32, #tpu.memory_space<vmem>>, vector<1x1x8x1xf32>,
    return
  }
  func.func @transform_0(%arg0: i32, %arg1: i32) -> (i32, i32, i32) {
    %c0_i32 = arith.constant 0 : i32
    %c0_i32_0 = arith.constant 0 : i32
    return %arg0, %c0_i32, %arg1 : i32, i32, i32
  }
  func.func @transform_1(%arg0: i32, %arg1: i32) -> (i32, i32) {
    %c0_i32 = arith.constant 0 : i32
    %c0_i32_0 = arith.constant 0 : i32
    %c0_i32_1 = arith.constant 0 : i32
    return %c0_i32, %c0_i32_0 : i32, i32
  }
  func.func @transform_2(%arg0: i32, %arg1: i32) -> (i32, i32, i32, i32) {
    %c0_i32 = arith.constant 0 : i32
    %c0_i32_0 = arith.constant 0 : i32
    %c0_i32_1 = arith.constant 0 : i32
    return %arg0, %arg1, %c0_i32, %c0_i32_0 : i32, i32, i32, i32
  }
  func.func @transform_3(%arg0: i32, %arg1: i32) -> (i32, i32, i32, i32) {
    %c0_i32 = arith.constant 0 : i32
    %c0_i32_0 = arith.constant 0 : i32
    %c0_i32_1 = arith.constant 0 : i32
    return %arg0, %arg1, %c0_i32, %c0_i32_0 : i32, i32, i32, i32
  }
}

</mosaic_0001>

<llo_original>
// kernel: tpu_custom_call.1
$region0: #{tpu_custom_call.1}
  #allocation0 [shape = 'u32[]', space=smem, size = 0x4, offset = 0x4, fixed_abs, tag = 'smem constant byte address 0x4 - core index']
  #allocation1 [shape = 'u32[144,128]{1,0:T(1,128)}', space=vmem, size = 0x12000, scoped, tag = 'internal scratch']
  %s0 = inlined_call_operand.vmem [shape: bf16[2,36,64], index: 0, kind: input, shape index: {}]
  %s1 = inlined_call_operand.vmem [shape: bf16[8,36], index: 1, kind: input, shape index: {}]
  %s2 = inlined_call_operand.vmem [shape: f32[2,1,8,1], index: 2, kind: output, shape index: {0}]
  %s3 = inlined_call_operand.vmem [shape: f32[2,1,8,1], index: 3, kind: output, shape index: {1}]
  %4 = xla_tuple %s2, %s3
  %s5 = sld [smem:[#allocation0]]
  $region49: #{tpu_custom_call.1} parent=0
    _
  %s7 = ssub.s32 1, %s5
  %s8 = scalar_select 0, %s7, %s5
  loop: start=0, step=1, limit=4
  $region2: #{tpu_custom_call.1} parent=0 // loop_pre_header
    _
  $region3: #{tpu_custom_call.1} parent=0 // loop_header
    %s10 = sphi 0, %s14
    %p11 = scmp.ge.s32.totalorder %s10, 4
    %s17 = sphi 0, %s29
    %s18 = sphi 0, %s25
    %s19 = sphi 0, %s17
    %s20 = sphi 0, %s18
    %s21 = sphi 0, %s19
    %s22 = sphi 0, %s20
    %s34 = sphi 0, %s36
    %s37 = sphi 0, %s34
    %s38 = sphi 0, %s37
    %s54 = sphi 0, %s38
    %s58 = sphi 0, %s58
    %s60 = sphi 0, %s58
    %s61 = sphi 0, %s60
    %s75 = sphi 0, %s61
    %s83 = sphi 0, %s85
    %s86 = sphi 0, %s83
    %s87 = sphi 0, %s86
    %s103 = sphi 0, %s87
    %s111 = sphi 0, %s113
    %s114 = sphi 0, %s111
    %s115 = sphi 0, %s114
    %s131 = sphi 0, %s115
  $region4: #{tpu_custom_call.1} parent=0 // loop_header_branch
    %13 = sbr.rel (%p11) target = $region8
  $region5: #{tpu_custom_call.1} parent=0 // loop_body
    %s15 = ssub.s32 %s10, 1
    %s16 = ssub.s32 %s10, 2
    %s23 = sadd.s32 1, %s18
    %p24 = scmp.ge.s32.totalorder %s23, 1
    %s25 = scalar_select %p24, 0, %s23
    %s26 = sadd.s32 1, %s17
    %s27 = scalar_select %p24, %s26, %s17
    %p28 = scmp.ge.s32.totalorder %s27, 2
    %s29 = scalar_select %p28, 0, %s27
    %s30 = ssub.s32 %s17, %s29
    %s31 = ssub.s32 %s18, %s25
    %s32 = sor.u32 %s30, %s31
    %p33 = scmp.eq.s32.totalorder %s32, 0
    %s35 = sadd.s32 %s34, 1
    %s36 = scalar_select %p33, %s34, %s35
    %p39 = pneg %p33
    %p40 = scmp.eq.s32.totalorder %s10, 1
    %p41 = por %p39, %p40
    %p42 = scmp.ne.s32.totalorder %s34, %s37
    %p43 = scmp.eq.s32.totalorder %s10, 0
    %p44 = por %p42, %p43
    %p45 = scmp.ne.s32.totalorder %s34, %s37
    %p46 = scmp.eq.s32.totalorder %s15, 1
    %p47 = por %p45, %p46
    %p48 = scmp.ne.s32.totalorder %s37, %s38
    %p49 = scmp.eq.s32.totalorder %s15, 0
    %p50 = por %p48, %p49
    %p51 = scmp.ne.s32.totalorder %s37, %s38
    %p52 = scmp.eq.s32.totalorder %s16, 1
    %p53 = por %p51, %p52
    %p55 = scmp.ne.s32.totalorder %s38, %s54
    %p56 = scmp.eq.s32.totalorder %s16, 0
    %p57 = por %p55, %p56
    %s59 = sadd.s32 %s58, 1
    %p62 = scmp.eq.s32.totalorder %s10, 1
    %p63 = scmp.ne.s32.totalorder %s58, %s60
    %p64 = scmp.eq.s32.totalorder %s10, 0
    %p65 = por %p63, %p64
    %p66 = scmp.ne.s32.totalorder %s58, %s60
    %p67 = scmp.eq.s32.totalorder %s15, 1
    %p68 = por %p66, %p67
    %p69 = scmp.ne.s32.totalorder %s60, %s61
    %p70 = scmp.eq.s32.totalorder %s15, 0
    %p71 = por %p69, %p70
    %p72 = scmp.ne.s32.totalorder %s60, %s61
    %p73 = scmp.eq.s32.totalorder %s16, 1
    %p74 = por %p72, %p73
    %p76 = scmp.ne.s32.totalorder %s61, %s75
    %p77 = scmp.eq.s32.totalorder %s16, 0
    %p78 = por %p76, %p77
    %s79 = ssub.s32 %s17, %s29
    %s80 = ssub.s32 %s18, %s25
    %s81 = sor.u32 %s79, %s80
    %p82 = scmp.eq.s32.totalorder %s81, 0
    %s84 = sadd.s32 %s83, 1
    %s85 = scalar_select %p82, %s83, %s84
    %p88 = pneg %p82
    %p89 = scmp.eq.s32.totalorder %s10, 1
    %p90 = por %p88, %p89
    %p91 = scmp.ne.s32.totalorder %s83, %s86
    %p92 = scmp.eq.s32.totalorder %s10, 0
    %p93 = por %p91, %p92
    %p94 = scmp.ne.s32.totalorder %s83, %s86
    %p95 = scmp.eq.s32.totalorder %s15, 1
    %p96 = por %p94, %p95
    %p97 = scmp.ne.s32.totalorder %s86, %s87
    %p98 = scmp.eq.s32.totalorder %s15, 0
    %p99 = por %p97, %p98
    %p100 = scmp.ne.s32.totalorder %s86, %s87
    %p101 = scmp.eq.s32.totalorder %s16, 1
    %p102 = por %p100, %p101
    %p104 = scmp.ne.s32.totalorder %s87, %s103
    %p105 = scmp.eq.s32.totalorder %s16, 0
    %p106 = por %p104, %p105
    %s107 = ssub.s32 %s17, %s29
    %s108 = ssub.s32 %s18, %s25
    %s109 = sor.u32 %s107, %s108
    %p110 = scmp.eq.s32.totalorder %s109, 0
    %s112 = sadd.s32 %s111, 1
    %s113 = scalar_select %p110, %s111, %s112
    %p116 = pneg %p110
    %p117 = scmp.eq.s32.totalorder %s10, 1
    %p118 = por %p116, %p117
    %p119 = scmp.ne.s32.totalorder %s111, %s114
    %p120 = scmp.eq.s32.totalorder %s10, 0
    %p121 = por %p119, %p120
    %p122 = scmp.ne.s32.totalorder %s111, %s114
    %p123 = scmp.eq.s32.totalorder %s15, 1
    %p124 = por %p122, %p123
    %p125 = scmp.ne.s32.totalorder %s114, %s115
    %p126 = scmp.eq.s32.totalorder %s15, 0
    %p127 = por %p125, %p126
    %p128 = scmp.ne.s32.totalorder %s114, %s115
    %p129 = scmp.eq.s32.totalorder %s16, 1
    %p130 = por %p128, %p129
    %p132 = scmp.ne.s32.totalorder %s115, %s131
    %p133 = scmp.eq.s32.totalorder %s16, 0
    %p134 = por %p132, %p133
    %p135 = scmp.le.s32.totalorder 1, %s10
    %p136 = scmp.lt.s32.totalorder %s10, 3
    %p137 = pnand %p135, %p136
    %p138 = pneg %p137
    // Predicated region
    $region9: #{tpu_custom_call.1} parent=5 // pred_check
      _
    $region10: #{tpu_custom_call.1} parent=5 // pred_check_branch
      %140 = sbr.rel (%p137) target = $region12
    $region11: #{tpu_custom_call.1} parent=5 // pred_region
      %s141 = ssub.s32 %s10, 1
      // Predicated region
      $region13: #{tpu_custom_call.1} parent=11 // pred_check
        %p142 = pneg %p71
      $region14: #{tpu_custom_call.1} parent=11 // pred_check_branch
        %144 = sbr.rel (%p142) target = $region16
      $region15: #{tpu_custom_call.1} parent=11 // pred_region
        _
      $region16: #{tpu_custom_call.1} parent=11 // pred_fallthru
        _
    $region12: #{tpu_custom_call.1} parent=5 // pred_fallthru
      _
    %p145 = scmp.lt.s32.totalorder %s10, 2
    // Predicated region
    $region17: #{tpu_custom_call.1} parent=5 // pred_check
      %p146 = pneg %p145
    $region18: #{tpu_custom_call.1} parent=5 // pred_check_branch
      %148 = sbr.rel (%p146) target = $region20
    $region19: #{tpu_custom_call.1} parent=5 // pred_region
      // Predicated region
      $region21: #{tpu_custom_call.1} parent=19 // pred_check
        %p149 = pneg %p44
      $region22: #{tpu_custom_call.1} parent=19 // pred_check_branch
        %151 = sbr.rel (%p149) target = $region24
      $region23: #{tpu_custom_call.1} parent=19 // pred_region
        %p152 = scmp.lt.s32.totalorder %s17, 1
        %s153 = scalar_select %p152, %s17, 1
        %p154 = scmp.lt.s32.totalorder %s18, 0
        %s155 = scalar_select %p154, %s18, 0
        %s156 = smul.addr %s153, 5
        %s157 = sadd.s32 %s155, %s156
        %s158 = smul.addr %s157, 4
        %s159 = scalar_lea.vmem %s0, %s158
      $region24: #{tpu_custom_call.1} parent=19 // pred_fallthru
        _
    $region20: #{tpu_custom_call.1} parent=5 // pred_fallthru
      _
    %p160 = scmp.le.s32.totalorder 1, %s10
    %p161 = scmp.lt.s32.totalorder %s10, 3
    %p162 = pnand %p160, %p161
    %p163 = pneg %p162
    // Predicated region
    $region25: #{tpu_custom_call.1} parent=5 // pred_check
      _
    $region26: #{tpu_custom_call.1} parent=5 // pred_check_branch
      %165 = sbr.rel (%p162) target = $region28
    $region27: #{tpu_custom_call.1} parent=5 // pred_region
      %s166 = ssub.s32 %s10, 1
      %p167 = scmp.lt.s32.totalorder %s19, 1
      %s168 = scalar_select %p167, %s19, 1
      %p169 = scmp.lt.s32.totalorder %s20, 0
      %s170 = scalar_select %p169, %s20, 0
      %s171 = smul.addr %s168, 5
      %s172 = sadd.s32 %s170, %s171
      %s173 = smul.addr %s172, 4
      %s174 = scalar_lea.vmem %s0, %s173
      %p175 = pneg %p50
      %p176 = pneg %p47
      %p177 = pneg %p71
      %p178 = pneg %p68
      %p179 = pneg %p99
      %p180 = pneg %p96
      %p181 = scmp.lt.s32.totalorder %s19, 1
      %s182 = scalar_select %p181, %s19, 1
      %p183 = scmp.lt.s32.totalorder %s20, 0
      %s184 = scalar_select %p183, %s20, 0
      %s185 = sadd.s32 %s184, %s182
      %s186 = smul.addr %s185, 8
      %s187 = scalar_lea.vmem %s2, %s186
      %p188 = pneg %p127
      %p189 = pneg %p124
      %p190 = scmp.lt.s32.totalorder %s19, 1
      %s191 = scalar_select %p190, %s19, 1
      %p192 = scmp.lt.s32.totalorder %s20, 0
      %s193 = scalar_select %p192, %s20, 0
      %s194 = sadd.s32 %s193, %s191
      %s195 = smul.addr %s194, 8
      %s196 = scalar_lea.vmem %s3, %s195
      %p197 = scmp.lt.s32.totalorder %s19, 1
      %s198 = scalar_select %p197, %s19, 1
      %p199 = scmp.lt.s32.totalorder %s20, 0
      %s200 = scalar_select %p199, %s20, 0
      %s201 = smul.addr %s198, 5
      %s202 = sadd.s32 %s200, %s201
      %s203 = smul.addr %s202, 4
      %s204 = scalar_lea.vmem %s0, %s203
      %p205 = scmp.lt.s32.totalorder %s19, 1
      %s206 = scalar_select %p205, %s19, 1
      %p207 = scmp.lt.s32.totalorder %s20, 0
      %s208 = scalar_select %p207, %s20, 0
      %s209 = sadd.s32 %s208, %s206
      %s210 = smul.addr %s209, 8
      %s211 = scalar_lea.vmem %s2, %s210
      %p212 = scmp.lt.s32.totalorder %s19, 1
      %s213 = scalar_select %p212, %s19, 1
      %p214 = scmp.lt.s32.totalorder %s20, 0
      %s215 = scalar_select %p214, %s20, 0
      %s216 = sadd.s32 %s215, %s213
      %s217 = smul.addr %s216, 8
      %s218 = scalar_lea.vmem %s3, %s217
      %v220 = vld [vmem:[%s1] sm:$0xf]
      %v221 = vld [vmem:[%s204] sm:$0xf]
      %v222 = vld [vmem:[%s204 + $0x4] sm:$0xf]
      %v223 = vld [vmem:[%s204 + $0x8] sm:$0xf]
      %v224 = vld [vmem:[%s204 + $0xc] sm:$0xf]
      %v225 = vld [vmem:[%s204 + $0x10] sm:$0x3]
      %v231 = vunpack.c.l.b16 %v221
      %v232 = vunpack.c.l.b16 %v222
      %v233 = vunpack.c.l.b16 %v223
      %v234 = vunpack.c.l.b16 %v224
      %v235 = vunpack.c.l.b16 %v225
      %v236 = vpack.c.b16 %v232, %v231
      %v237 = vpack.c.b16 %v234, %v233
      %v238 = vpack.c.b16 %v235, %v235
      %vm241 = vcmask 293888
      %v243 = vsel %vm241, %v220, 0
      %vm245 = vcmask 1041408
      %v247 = vsel %vm245, %v238, 0
      %249 = vmatprep.subr.bf16.mxu0 0
      %250 = vmatpush1.bf16.msra.mxu0 %v236
      %251 = vmatprep.subr.bf16.mxu0 0
      %252 = vmatpush1.bf16.msra.mxu0 %v237
      %253 = vmatprep.subr.bf16.mxu0 0
      %254 = vmatpush1.bf16.msra.mxu0 %v247
      %255 = vmatprep.subr.bf16.mxu0 0
      %256 = vmatpush1.bf16.msra.mxu0 0
      %257 = vmatprep.subr.bf16.mxu0 0
      %258 = vmatpush1.bf16.msra.mxu0 0
      %259 = vmatprep.subr.bf16.mxu0 0
      %260 = vmatpush1.bf16.msra.mxu0 0
      %261 = vmatprep.subr.bf16.mxu0 0
      %262 = vmatpush1.bf16.msra.mxu0 0
      %263 = vmatprep.subr.bf16.mxu0 0
      %264 = vmatpush1.bf16.msra.mxu0 0
      %265 = vmatprep.subr.bf16.mxu0 0
      %266 = vmatpush1.bf16.msra.mxu0 0
      %267 = vmatprep.subr.bf16.mxu0 0
      %268 = vmatpush1.bf16.msra.mxu0 0
      %269 = vmatprep.subr.bf16.mxu0 0
      %270 = vmatpush1.bf16.msra.mxu0 0
      %271 = vmatprep.subr.bf16.mxu0 0
      %272 = vmatpush1.bf16.msra.mxu0 0
      %273 = vmatprep.subr.bf16.mxu0 0
      %274 = vmatpush1.bf16.msra.mxu0 0
      %275 = vmatprep.subr.bf16.mxu0 0
      %276 = vmatpush1.bf16.msra.mxu0 0
      %277 = vmatprep.subr.bf16.mxu0 0
      %278 = vmatpush1.bf16.msra.mxu0 0
      %279 = vmatprep.subr.bf16.mxu0 0
      %280 = vmatpush1.bf16.msra.mxu0 0
      %281 = vmatprep.mubr.bf16.mxu0 0
      %282 = vmatmul.mubr.bf16.gmra.mrb[0].mxu0 %v243
      %v283 = vpop.f32.mrb[0].mxu0
      %v284 = vadd.f32 0.0, %v283
      %v285 = vpop.f32.mrb[0].mxu0
      %v286 = vpop.f32.mrb[0].mxu0
      %v287 = vpop.f32.mrb[0].mxu0
      %288 = vdwg.mxu0
      %vm289 = vcmask 523264
      %v290 = vsel %vm289, %v284, 0.0
      %291 = vadd.xlane.f32.xlu0 %v290
      %v292 = vpop.xlane.xlu0 %291
      %vm293 = vcmask 7168
      %294 = vst.msk [vmem:[%s211] sm:$0xff] %vm293, %v292
      %v295 = vmul.f32 %v284, %v284
      %v296 = vsel %vm289, %v295, 0.0
      %297 = vadd.xlane.f32.xlu0 %v296
      %v298 = vpop.xlane.xlu0 %297
      %299 = vst.msk [vmem:[%s218] sm:$0xff] %vm293, %v298
      %p300 = scmp.lt.s32.totalorder %s19, 1
      %s301 = scalar_select %p300, %s19, 1
      %p302 = scmp.lt.s32.totalorder %s20, 0
      %s303 = scalar_select %p302, %s20, 0
      %s304 = sadd.s32 %s303, %s301
      %s305 = smul.addr %s304, 8
      %s306 = scalar_lea.vmem %s2, %s305
      %p307 = scmp.lt.s32.totalorder %s19, 1
      %s308 = scalar_select %p307, %s19, 1
      %p309 = scmp.lt.s32.totalorder %s20, 0
      %s310 = scalar_select %p309, %s20, 0
      %s311 = sadd.s32 %s310, %s308
      %s312 = smul.addr %s311, 8
      %s313 = scalar_lea.vmem %s3, %s312
      // Predicated region
      $region29: #{tpu_custom_call.1} parent=27 // pred_check
        %p314 = pneg %p96
      $region30: #{tpu_custom_call.1} parent=27 // pred_check_branch
        %316 = sbr.rel (%p314) target = $region32
      $region31: #{tpu_custom_call.1} parent=27 // pred_region
        _
      $region32: #{tpu_custom_call.1} parent=27 // pred_fallthru
        _
      // Predicated region
      $region33: #{tpu_custom_call.1} parent=27 // pred_check
        %p317 = pneg %p124
      $region34: #{tpu_custom_call.1} parent=27 // pred_check_branch
        %319 = sbr.rel (%p317) target = $region36
      $region35: #{tpu_custom_call.1} parent=27 // pred_region
        _
      $region36: #{tpu_custom_call.1} parent=27 // pred_fallthru
        _
    $region28: #{tpu_custom_call.1} parent=5 // pred_fallthru
      _
    %p320 = scmp.le.s32.totalorder 2, %s10
    // Predicated region
    $region37: #{tpu_custom_call.1} parent=5 // pred_check
      %p321 = pneg %p320
    $region38: #{tpu_custom_call.1} parent=5 // pred_check_branch
      %323 = sbr.rel (%p321) target = $region40
    $region39: #{tpu_custom_call.1} parent=5 // pred_region
      %s324 = ssub.s32 %s10, 2
      // Predicated region
      $region41: #{tpu_custom_call.1} parent=39 // pred_check
        %p325 = pneg %p102
      $region42: #{tpu_custom_call.1} parent=39 // pred_check_branch
        %327 = sbr.rel (%p325) target = $region44
      $region43: #{tpu_custom_call.1} parent=39 // pred_region
        %p328 = scmp.lt.s32.totalorder %s21, 1
        %s329 = scalar_select %p328, %s21, 1
        %p330 = scmp.lt.s32.totalorder %s22, 0
        %s331 = scalar_select %p330, %s22, 0
        %s332 = sadd.s32 %s331, %s329
        %s333 = smul.addr %s332, 8
        %s334 = scalar_lea.vmem %s2, %s333
      $region44: #{tpu_custom_call.1} parent=39 // pred_fallthru
        _
      // Predicated region
      $region45: #{tpu_custom_call.1} parent=39 // pred_check
        %p335 = pneg %p130
      $region46: #{tpu_custom_call.1} parent=39 // pred_check_branch
        %337 = sbr.rel (%p335) target = $region48
      $region47: #{tpu_custom_call.1} parent=39 // pred_region
        %p338 = scmp.lt.s32.totalorder %s21, 1
        %s339 = scalar_select %p338, %s21, 1
        %p340 = scmp.lt.s32.totalorder %s22, 0
        %s341 = scalar_select %p340, %s22, 0
        %s342 = sadd.s32 %s341, %s339
        %s343 = smul.addr %s342, 8
        %s344 = scalar_lea.vmem %s3, %s343
      $region48: #{tpu_custom_call.1} parent=39 // pred_fallthru
        _
    $region40: #{tpu_custom_call.1} parent=5 // pred_fallthru
      _
  $region6: #{tpu_custom_call.1} parent=0 // loop_footer
    %s14 = sadd.s32 1, %s10
  $region7: #{tpu_custom_call.1} parent=0 // loop_footer_branch
    %9 = sbr.rel target = $region3
  $region8: #{tpu_custom_call.1} parent=0 // loop_exit
    _

</llo_original>
